<compile_context>
chip_gen: v5e
topology: v5e:2x2
jax: 0.10.0
libtpu: 0.0.40
codegen_flags: <defaults>
</compile_context>

<pallas_src>
import math

import jax
import jax.numpy as jnp
from jax.experimental import pallas as pl
from jax.experimental.pallas import tpu as pltpu

EMBED_DIM = 32
FFN_DIM = 4 * EMBED_DIM     # ffn_dim is passed via **kwargs in the original module
LN_EPS = 1e-5
_GELU_C = math.sqrt(2.0 / math.pi)


def _residual_ffn_kernel(x_ref, wfc_ref, bfc_ref, wproj_ref, bproj_ref,
                         lnw_ref, lnb_ref, o_ref):
    # Channel-major tile: rows = channels (sublanes), cols = tokens (lanes).
    x = x_ref[...].astype(jnp.float32)                                    # (E, T)

    # c_fc: 1x1 conv == per-token linear.  Wfc (F, E) @ x (E, T) -> (F, T)  (no transpose)
    h = jnp.dot(wfc_ref[...], x, preferred_element_type=jnp.float32)
    h = h + bfc_ref[...]                                                  # (F, 1) lane-bcast

    # new_gelu (tanh approximation, exactly as in the PyTorch reference)
    h = 0.5 * h * (1.0 + jnp.tanh(_GELU_C * (h + 0.044715 * h * h * h)))

    # TODO(synk): nn.Dropout / rdropout are eval-mode identity; training-mode masking omitted.

    # c_proj: Wproj (E, F) @ h (F, T) -> (E, T)  (no transpose)
    r = jnp.dot(wproj_ref[...], h, preferred_element_type=jnp.float32)
    r = r + bproj_ref[...]                                                # (E, 1) lane-bcast

    # residual add
    y = r + x

    # LayerNormANE: normalize over the channel dim (rows -> sublane reduction),
    # then (out + bias) * weight  (ANE-specific affine order).
    mean = jnp.mean(y, axis=0, keepdims=True)                             # (1, T)
    zm = y - mean
    var = jnp.mean(zm * zm, axis=0, keepdims=True)
    out = zm * jax.lax.rsqrt(var + LN_EPS)
    out = (out + lnb_ref[...]) * lnw_ref[...]                             # (E, 1) lane-bcast

    o_ref[...] = out.astype(o_ref.dtype)


def _pick_token_tile(seq, max_tile=4096):
    """Largest lane tile: a multiple of 128 (<= max_tile) for long sequences,
    the full sequence extent for short ones. Partial trailing blocks are handled
    by a cdiv grid (safe: every op in the kernel is per-token-column independent)."""
    if seq <= 128:
        return seq                       # single full-extent lane block (always legal)
    t = min(max_tile, seq)
    t -= t % 128
    return max(t, 128)


def residual_ffn(x_nchw, w_fc, b_fc, w_proj, b_proj, ln_w, ln_b, *, max_token_tile=4096):
    """x_nchw: (B, E, 1, S) float32. Returns the same shape."""
    B, E, H, S = x_nchw.shape
    assert H == 1
    F = w_fc.shape[0]

    # (B, E, 1, S) -> (B, E, S): singleton squeeze, no HBM relayout / transpose.
    x3d = x_nchw.reshape(B, E, S)

    tt = _pick_token_tile(S, max_token_tile)
    grid = (B, pl.cdiv(S, tt))

    out3d = pl.pallas_call(
        _residual_ffn_kernel,
        out_shape=jax.ShapeDtypeStruct((B, E, S), x_nchw.dtype),
        grid_spec=pltpu.PrefetchScalarGridSpec(
            num_scalar_prefetch=0,
            grid=grid,
            in_specs=[
                # Activation tile: channels on sublanes, tokens on lanes (lane-dense).
                pl.BlockSpec((None, E, tt), lambda b, t: (b, 0, t)),
                # Loop-invariant params: full blocks, constant index -> DMA'd once, resident.
                pl.BlockSpec((F, E), lambda b, t: (0, 0)),   # W_fc   (F, E)
                pl.BlockSpec((F, 1), lambda b, t: (0, 0)),   # b_fc   (F, 1)
                pl.BlockSpec((E, F), lambda b, t: (0, 0)),   # W_proj (E, F)
                pl.BlockSpec((E, 1), lambda b, t: (0, 0)),   # b_proj (E, 1)
                pl.BlockSpec((E, 1), lambda b, t: (0, 0)),   # ln weight
                pl.BlockSpec((E, 1), lambda b, t: (0, 0)),   # ln bias
            ],
            out_specs=pl.BlockSpec((None, E, tt), lambda b, t: (b, 0, t)),
        ),
        compiler_params=pltpu.CompilerParams(
            dimension_semantics=("parallel", "parallel"),
            vmem_limit_bytes=64 << 20),
    )(x3d, w_fc, b_fc.reshape(F, 1), w_proj, b_proj.reshape(E, 1),
      ln_w.reshape(E, 1), ln_b.reshape(E, 1))

    # (B, E, S) -> (B, E, 1, S): free singleton unsqueeze.
    return out3d.reshape(B, E, 1, S)


def _reference(x_nchw, w_fc, b_fc, w_proj, b_proj, ln_w, ln_b):
    """Pure-JAX reference mirroring the PyTorch forward (eval mode)."""
    x = x_nchw.astype(jnp.float32)                      # (B, E, 1, S)
    h = jnp.einsum('oe,behs->bohs', w_fc, x) + b_fc[None, :, None, None]
    c = math.sqrt(2.0 / math.pi)
    h = 0.5 * h * (1.0 + jnp.tanh(c * (h + 0.044715 * h ** 3)))
    r = jnp.einsum('of,bfhs->bohs', w_proj, h) + b_proj[None, :, None, None]
    y = r + x
    mean = jnp.mean(y, axis=1, keepdims=True)
    zm = y - mean
    var = jnp.mean(zm * zm, axis=1, keepdims=True)
    out = zm * jax.lax.rsqrt(var + LN_EPS)
    out = (out + ln_b[None, :, None, None]) * ln_w[None, :, None, None]
    return out


if __name__ == "__main__":
    B, S = 2, 16
    key = jax.random.PRNGKey(0)
    kx, k1, k2, k3, k4 = jax.random.split(key, 5)

    x = jax.random.normal(kx, (B, EMBED_DIM, 1, S), dtype=jnp.float32)

    # Deterministic synthetic parameters (Conv2d 1x1 weights squeezed to 2-D).
    w_fc = 0.05 * jax.random.normal(k1, (FFN_DIM, EMBED_DIM), dtype=jnp.float32)
    b_fc = 0.01 * jax.random.normal(k2, (FFN_DIM,), dtype=jnp.float32)
    w_proj = 0.05 * jax.random.normal(k3, (EMBED_DIM, FFN_DIM), dtype=jnp.float32)
    b_proj = 0.01 * jax.random.normal(k4, (EMBED_DIM,), dtype=jnp.float32)
    ln_w = jnp.ones((EMBED_DIM,), dtype=jnp.float32)
    ln_b = jnp.zeros((EMBED_DIM,), dtype=jnp.float32)

    out = residual_ffn(x, w_fc, b_fc, w_proj, b_proj, ln_w, ln_b)
    out = jax.block_until_ready(out)

    ref = _reference(x, w_fc, b_fc, w_proj, b_proj, ln_w, ln_b)
    assert out.shape == x.shape
    assert jnp.allclose(out, ref, atol=1e-4, rtol=1e-4), "mismatch vs reference"

    print("KERNEL_OK")
</pallas_src>

<mosaic_0001>
module attributes {stable_mosaic.version = 11 : i64} {
  func.func @_residual_ffn_kernel(%arg0: i32, %arg1: i32, %arg2: memref<1x32x16xf32, #tpu.memory_space<vmem>>, %arg3: memref<128x32xf32, #tpu.memory_space<vmem>>, %arg4: memref<128x1xf32, #tpu.memory_space<vmem>>, %arg5: memref<32x128xf32, #tpu.memory_space<vmem>>, %arg6: memref<32x1xf32, #tpu.memory_space<vmem>>, %arg7: memref<32x1xf32, #tpu.memory_space<vmem>>, %arg8: memref<32x1xf32, #tpu.memory_space<vmem>>, %arg9: memref<1x32x16xf32, #tpu.memory_space<vmem>>) attributes {dimension_semantics = [#tpu.dimension_semantics<parallel>, #tpu.dimension_semantics<parallel>], iteration_bounds = array<i64: 2, 1>, scalar_prefetch = 0 : i64, scratch_operands = 0 : i64, tpu.core_type = #tpu.core_type<tc>, window_params = [{transform_indices = @transform_0, window_bounds = array<i64: 1, 32, 16>}, {pipeline_mode = #tpu.pipeline_mode<synchronous>, transform_indices = @transform_1, window_bounds = array<i64: 128, 32>}, {pipeline_mode = #tpu.pipeline_mode<synchronous>, transform_indices = @transform_2, window_bounds = array<i64: 128, 1>}, {pipeline_mode = #tpu.pipeline_mode<synchronous>, transform_indices = @transform_3, window_bounds = array<i64: 32, 128>}, {pipeline_mode = #tpu.pipeline_mode<synchronous>, transform_indices = @transform_4, window_bounds = array<i64: 32, 1>}, {pipeline_mode = #tpu.pipeline_mode<synchronous>, transform_indices = @transform_5, window_bounds = array<i64: 32, 1>}, {pipeline_mode = #tpu.pipeline_mode<synchronous>, transform_indices = @transform_6, window_bounds = array<i64: 32, 1>}, {transform_indices = @transform_7, window_bounds = array<i64: 1, 32, 16>}]} {
    %c0 = arith.constant 0 : index
    %c0_0 = arith.constant 0 : index
    %c0_1 = arith.constant 0 : index
    %0 = vector.load %arg2[%c0, %c0_0, %c0_1] : memref<1x32x16xf32, #tpu.memory_space<vmem>>, vector<1x32x16xf32>
    %1 = vector.shape_cast %0 : vector<1x32x16xf32> to vector<32x16xf32>
    %c0_2 = arith.constant 0 : index
    %c0_3 = arith.constant 0 : index
    %2 = vector.load %arg3[%c0_2, %c0_3] : memref<128x32xf32, #tpu.memory_space<vmem>>, vector<128x32xf32>
    %cst = arith.constant dense<0.000000e+00> : vector<128x16xf32>
    %3 = tpu.matmul %2, %1, %cst {dimension_numbers = #tpu.dot_dimension_numbers<[1], [0], [0], [1], [0, 0, 1, 1], [], []>} : vector<128x32xf32>, vector<32x16xf32>, vector<128x16xf32> -> vector<128x16xf32>
    %c0_4 = arith.constant 0 : index
    %c0_5 = arith.constant 0 : index
    %4 = vector.load %arg4[%c0_4, %c0_5] : memref<128x1xf32, #tpu.memory_space<vmem>>, vector<128x1xf32>
    %5 = vector.broadcast %4 : vector<128x1xf32> to vector<128x16xf32>
    %6 = arith.addf %3, %5 : vector<128x16xf32>
    %cst_6 = arith.constant 5.000000e-01 : f32
    %7 = vector.broadcast %cst_6 : f32 to vector<128x16xf32>
    %8 = arith.mulf %7, %6 : vector<128x16xf32>
    %cst_7 = arith.constant 4.471500e-02 : f32
    %9 = vector.broadcast %cst_7 : f32 to vector<128x16xf32>
    %10 = arith.mulf %9, %6 : vector<128x16xf32>
    %11 = arith.mulf %10, %6 : vector<128x16xf32>
    %12 = arith.mulf %11, %6 : vector<128x16xf32>
    %13 = arith.addf %6, %12 : vector<128x16xf32>
    %cst_8 = arith.constant 0.797884583 : f32
    %14 = vector.broadcast %cst_8 : f32 to vector<128x16xf32>
    %15 = arith.mulf %14, %13 : vector<128x16xf32>
    %16 = math.tanh %15 : vector<128x16xf32>
    %cst_9 = arith.constant 1.000000e+00 : f32
    %17 = vector.broadcast %cst_9 : f32 to vector<128x16xf32>
    %18 = arith.addf %17, %16 : vector<128x16xf32>
    %19 = arith.mulf %8, %18 : vector<128x16xf32>
    %c0_10 = arith.constant 0 : index
    %c0_11 = arith.constant 0 : index
    %20 = vector.load %arg5[%c0_10, %c0_11] : memref<32x128xf32, #tpu.memory_space<vmem>>, vector<32x128xf32>
    %cst_12 = arith.constant dense<0.000000e+00> : vector<32x16xf32>
    %21 = tpu.matmul %20, %19, %cst_12 {dimension_numbers = #tpu.dot_dimension_numbers<[1], [0], [0], [1], [0, 0, 1, 1], [], []>} : vector<32x128xf32>, vector<128x16xf32>, vector<32x16xf32> -> vector<32x16xf32>
    %c0_13 = arith.constant 0 : index
    %c0_14 = arith.constant 0 : index
    %22 = vector.load %arg6[%c0_13, %c0_14] : memref<32x1xf32, #tpu.memory_space<vmem>>, vector<32x1xf32>
    %23 = vector.broadcast %22 : vector<32x1xf32> to vector<32x16xf32>
    %24 = arith.addf %21, %23 : vector<32x16xf32>
    %25 = arith.addf %24, %1 : vector<32x16xf32>
    %cst_15 = arith.constant dense<0.000000e+00> : vector<16xf32>
    %26 = vector.multi_reduction <add>, %25, %cst_15 [0] : vector<32x16xf32> to vector<16xf32>
    %27 = vector.shape_cast %26 : vector<16xf32> to vector<1x16xf32>
    %cst_16 = arith.constant 3.200000e+01 : f32
    %28 = vector.broadcast %cst_16 : f32 to vector<1x16xf32>
    %29 = arith.divf %27, %28 : vector<1x16xf32>
    %30 = vector.broadcast %29 : vector<1x16xf32> to vector<32x16xf32>
    %31 = arith.subf %25, %30 : vector<32x16xf32>
    %32 = arith.mulf %31, %31 : vector<32x16xf32>
    %cst_17 = arith.constant dense<0.000000e+00> : vector<16xf32>
    %33 = vector.multi_reduction <add>, %32, %cst_17 [0] : vector<32x16xf32> to vector<16xf32>
    %34 = vector.shape_cast %33 : vector<16xf32> to vector<1x16xf32>
    %cst_18 = arith.constant 3.200000e+01 : f32
    %35 = vector.broadcast %cst_18 : f32 to vector<1x16xf32>
    %36 = arith.divf %34, %35 : vector<1x16xf32>
    %cst_19 = arith.constant 9.99999974E-6 : f32
    %37 = vector.broadcast %cst_19 : f32 to vector<1x16xf32>
    %38 = arith.addf %36, %37 : vector<1x16xf32>
    %39 = math.rsqrt %38 : vector<1x16xf32>
    %40 = vector.broadcast %39 : vector<1x16xf32> to vector<32x16xf32>
    %41 = arith.mulf %31, %40 : vector<32x16xf32>
    %c0_20 = arith.constant 0 : index
    %c0_21 = arith.constant 0 : index
    %42 = vector.load %arg8[%c0_20, %c0_21] : memref<32x1xf32, #tpu.memory_space<vmem>>, vector<32x1xf32>
    %43 = vector.broadcast %42 : vector<32x1xf32> to vector<32x16xf32>
    %44 = arith.addf %41, %43 : vector<32x16xf32>
    %c0_22 = arith.constant 0 : index
    %c0_23 = arith.constant 0 : index
    %45 = vector.load %arg7[%c0_22, %c0_23] : memref<32x1xf32, #tpu.memory_space<vmem>>, vector<32x1xf32>
    %46 = vector.broadcast %45 : vector<32x1xf32> to vector<32x16xf32>
    %47 = arith.mulf %44, %46 : vector<32x16xf32>
    %c0_24 = arith.constant 0 : index
    %c0_25 = arith.constant 0 : index
    %c0_26 = arith.constant 0 : index
    %48 = vector.load %arg9[%c0_24, %c0_25, %c0_26] : memref<1x32x16xf32, #tpu.memory_space<vmem>>, vector<1x32x16xf32>
    %49 = vector.shape_cast %48 : vector<1x32x16xf32> to vector<32x16xf32>
    %50 = vector.shape_cast %47 : vector<32x16xf32> to vector<1x32x16xf32>
    tpu.vector_store %arg9[%c0_24, %c0_25, %c0_26], %50 {strides = array<i32>} : memref<1x32x16xf32, #tpu.memory_space<vmem>>, vector<1x32x16xf32>,
    return
  }
  func.func @transform_0(%arg0: i32, %arg1: i32) -> (i32, i32, i32) {
    %c0_i32 = arith.constant 0 : i32
    %c0_i32_0 = arith.constant 0 : i32
    return %arg0, %c0_i32, %arg1 : i32, i32, i32
  }
  func.func @transform_1(%arg0: i32, %arg1: i32) -> (i32, i32) {
    %c0_i32 = arith.constant 0 : i32
    %c0_i32_0 = arith.constant 0 : i32
    %c0_i32_1 = arith.constant 0 : i32
    return %c0_i32, %c0_i32_0 : i32, i32
  }
  func.func @transform_2(%arg0: i32, %arg1: i32) -> (i32, i32) {
    %c0_i32 = arith.constant 0 : i32
    %c0_i32_0 = arith.constant 0 : i32
    %c0_i32_1 = arith.constant 0 : i32
    return %c0_i32, %c0_i32_0 : i32, i32
  }
  func.func @transform_3(%arg0: i32, %arg1: i32) -> (i32, i32) {
    %c0_i32 = arith.constant 0 : i32
    %c0_i32_0 = arith.constant 0 : i32
    %c0_i32_1 = arith.constant 0 : i32
    return %c0_i32, %c0_i32_0 : i32, i32
  }
  func.func @transform_4(%arg0: i32, %arg1: i32) -> (i32, i32) {
    %c0_i32 = arith.constant 0 : i32
    %c0_i32_0 = arith.constant 0 : i32
    %c0_i32_1 = arith.constant 0 : i32
    return %c0_i32, %c0_i32_0 : i32, i32
  }
  func.func @transform_5(%arg0: i32, %arg1: i32) -> (i32, i32) {
    %c0_i32 = arith.constant 0 : i32
    %c0_i32_0 = arith.constant 0 : i32
    %c0_i32_1 = arith.constant 0 : i32
    return %c0_i32, %c0_i32_0 : i32, i32
  }
  func.func @transform_6(%arg0: i32, %arg1: i32) -> (i32, i32) {
    %c0_i32 = arith.constant 0 : i32
    %c0_i32_0 = arith.constant 0 : i32
    %c0_i32_1 = arith.constant 0 : i32
    return %c0_i32, %c0_i32_0 : i32, i32
  }
  func.func @transform_7(%arg0: i32, %arg1: i32) -> (i32, i32, i32) {
    %c0_i32 = arith.constant 0 : i32
    %c0_i32_0 = arith.constant 0 : i32
    return %arg0, %c0_i32, %arg1 : i32, i32, i32
  }
}

</mosaic_0001>

<llo_original>
// kernel: tpu_custom_call.1
$region0: #{tpu_custom_call.1}
  #allocation0 [shape = 'u32[]', space=smem, size = 0x4, offset = 0x4, fixed_abs, tag = 'smem constant byte address 0x4 - core index']
  #allocation1 [shape = 'u32[72,128]{1,0:T(1,128)}', space=vmem, size = 0x9000, scoped, tag = 'internal scratch']
  %s0 = inlined_call_operand.vmem [shape: f32[2,32,16], index: 0, kind: input, shape index: {}]
  %s1 = inlined_call_operand.vmem [shape: f32[128,32], index: 1, kind: input, shape index: {}]
  %s2 = inlined_call_operand.vmem [shape: f32[128,1], index: 2, kind: input, shape index: {}]
  %s3 = inlined_call_operand.vmem [shape: f32[32,128], index: 3, kind: input, shape index: {}]
  %s4 = inlined_call_operand.vmem [shape: f32[32,1], index: 4, kind: input, shape index: {}]
  %s5 = inlined_call_operand.vmem [shape: f32[32,1], index: 5, kind: input, shape index: {}]
  %s6 = inlined_call_operand.vmem [shape: f32[32,1], index: 6, kind: input, shape index: {}]
  %s7 = inlined_call_operand.vmem [shape: f32[2,32,16], index: 7, kind: output, shape index: {}]
  %s8 = sld [smem:[#allocation0]]
  $region61: #{tpu_custom_call.1} parent=0
    _
  %s10 = ssub.s32 1, %s8
  %s11 = scalar_select 0, %s10, %s8
  loop: start=0, step=1, limit=4
  $region2: #{tpu_custom_call.1} parent=0 // loop_pre_header
    _
  $region3: #{tpu_custom_call.1} parent=0 // loop_header
    %s13 = sphi 0, %s17
    %p14 = scmp.ge.s32.totalorder %s13, 4
    %s20 = sphi 0, %s32
    %s21 = sphi 0, %s28
    %s22 = sphi 0, %s20
    %s23 = sphi 0, %s21
    %s24 = sphi 0, %s22
    %s25 = sphi 0, %s23
    %s37 = sphi 0, %s39
    %s40 = sphi 0, %s37
    %s41 = sphi 0, %s40
    %s57 = sphi 0, %s41
    %s61 = sphi 0, %s61
    %s63 = sphi 0, %s61
    %s64 = sphi 0, %s63
    %s78 = sphi 0, %s64
    %s82 = sphi 0, %s82
    %s84 = sphi 0, %s82
    %s85 = sphi 0, %s84
    %s99 = sphi 0, %s85
    %s103 = sphi 0, %s103
    %s105 = sphi 0, %s103
    %s106 = sphi 0, %s105
    %s120 = sphi 0, %s106
    %s124 = sphi 0, %s124
    %s126 = sphi 0, %s124
    %s127 = sphi 0, %s126
    %s141 = sphi 0, %s127
    %s145 = sphi 0, %s145
    %s147 = sphi 0, %s145
    %s148 = sphi 0, %s147
    %s162 = sphi 0, %s148
    %s166 = sphi 0, %s166
    %s168 = sphi 0, %s166
    %s169 = sphi 0, %s168
    %s183 = sphi 0, %s169
    %s191 = sphi 0, %s193
    %s194 = sphi 0, %s191
    %s195 = sphi 0, %s194
    %s211 = sphi 0, %s195
  $region4: #{tpu_custom_call.1} parent=0 // loop_header_branch
    %16 = sbr.rel (%p14) target = $region8
  $region5: #{tpu_custom_call.1} parent=0 // loop_body
    %s18 = ssub.s32 %s13, 1
    %s19 = ssub.s32 %s13, 2
    %s26 = sadd.s32 1, %s21
    %p27 = scmp.ge.s32.totalorder %s26, 1
    %s28 = scalar_select %p27, 0, %s26
    %s29 = sadd.s32 1, %s20
    %s30 = scalar_select %p27, %s29, %s20
    %p31 = scmp.ge.s32.totalorder %s30, 2
    %s32 = scalar_select %p31, 0, %s30
    %s33 = ssub.s32 %s20, %s32
    %s34 = ssub.s32 %s21, %s28
    %s35 = sor.u32 %s33, %s34
    %p36 = scmp.eq.s32.totalorder %s35, 0
    %s38 = sadd.s32 %s37, 1
    %s39 = scalar_select %p36, %s37, %s38
    %p42 = pneg %p36
    %p43 = scmp.eq.s32.totalorder %s13, 1
    %p44 = por %p42, %p43
    %p45 = scmp.ne.s32.totalorder %s37, %s40
    %p46 = scmp.eq.s32.totalorder %s13, 0
    %p47 = por %p45, %p46
    %p48 = scmp.ne.s32.totalorder %s37, %s40
    %p49 = scmp.eq.s32.totalorder %s18, 1
    %p50 = por %p48, %p49
    %p51 = scmp.ne.s32.totalorder %s40, %s41
    %p52 = scmp.eq.s32.totalorder %s18, 0
    %p53 = por %p51, %p52
    %p54 = scmp.ne.s32.totalorder %s40, %s41
    %p55 = scmp.eq.s32.totalorder %s19, 1
    %p56 = por %p54, %p55
    %p58 = scmp.ne.s32.totalorder %s41, %s57
    %p59 = scmp.eq.s32.totalorder %s19, 0
    %p60 = por %p58, %p59
    %s62 = sadd.s32 %s61, 1
    %p65 = scmp.eq.s32.totalorder %s13, 1
    %p66 = scmp.ne.s32.totalorder %s61, %s63
    %p67 = scmp.eq.s32.totalorder %s13, 0
    %p68 = por %p66, %p67
    %p69 = scmp.ne.s32.totalorder %s61, %s63
    %p70 = scmp.eq.s32.totalorder %s18, 1
    %p71 = por %p69, %p70
    %p72 = scmp.ne.s32.totalorder %s63, %s64
    %p73 = scmp.eq.s32.totalorder %s18, 0
    %p74 = por %p72, %p73
    %p75 = scmp.ne.s32.totalorder %s63, %s64
    %p76 = scmp.eq.s32.totalorder %s19, 1
    %p77 = por %p75, %p76
    %p79 = scmp.ne.s32.totalorder %s64, %s78
    %p80 = scmp.eq.s32.totalorder %s19, 0
    %p81 = por %p79, %p80
    %s83 = sadd.s32 %s82, 1
    %p86 = scmp.eq.s32.totalorder %s13, 1
    %p87 = scmp.ne.s32.totalorder %s82, %s84
    %p88 = scmp.eq.s32.totalorder %s13, 0
    %p89 = por %p87, %p88
    %p90 = scmp.ne.s32.totalorder %s82, %s84
    %p91 = scmp.eq.s32.totalorder %s18, 1
    %p92 = por %p90, %p91
    %p93 = scmp.ne.s32.totalorder %s84, %s85
    %p94 = scmp.eq.s32.totalorder %s18, 0
    %p95 = por %p93, %p94
    %p96 = scmp.ne.s32.totalorder %s84, %s85
    %p97 = scmp.eq.s32.totalorder %s19, 1
    %p98 = por %p96, %p97
    %p100 = scmp.ne.s32.totalorder %s85, %s99
    %p101 = scmp.eq.s32.totalorder %s19, 0
    %p102 = por %p100, %p101
    %s104 = sadd.s32 %s103, 1
    %p107 = scmp.eq.s32.totalorder %s13, 1
    %p108 = scmp.ne.s32.totalorder %s103, %s105
    %p109 = scmp.eq.s32.totalorder %s13, 0
    %p110 = por %p108, %p109
    %p111 = scmp.ne.s32.totalorder %s103, %s105
    %p112 = scmp.eq.s32.totalorder %s18, 1
    %p113 = por %p111, %p112
    %p114 = scmp.ne.s32.totalorder %s105, %s106
    %p115 = scmp.eq.s32.totalorder %s18, 0
    %p116 = por %p114, %p115
    %p117 = scmp.ne.s32.totalorder %s105, %s106
    %p118 = scmp.eq.s32.totalorder %s19, 1
    %p119 = por %p117, %p118
    %p121 = scmp.ne.s32.totalorder %s106, %s120
    %p122 = scmp.eq.s32.totalorder %s19, 0
    %p123 = por %p121, %p122
    %s125 = sadd.s32 %s124, 1
    %p128 = scmp.eq.s32.totalorder %s13, 1
    %p129 = scmp.ne.s32.totalorder %s124, %s126
    %p130 = scmp.eq.s32.totalorder %s13, 0
    %p131 = por %p129, %p130
    %p132 = scmp.ne.s32.totalorder %s124, %s126
    %p133 = scmp.eq.s32.totalorder %s18, 1
    %p134 = por %p132, %p133
    %p135 = scmp.ne.s32.totalorder %s126, %s127
    %p136 = scmp.eq.s32.totalorder %s18, 0
    %p137 = por %p135, %p136
    %p138 = scmp.ne.s32.totalorder %s126, %s127
    %p139 = scmp.eq.s32.totalorder %s19, 1
    %p140 = por %p138, %p139
    %p142 = scmp.ne.s32.totalorder %s127, %s141
    %p143 = scmp.eq.s32.totalorder %s19, 0
    %p144 = por %p142, %p143
    %s146 = sadd.s32 %s145, 1
    %p149 = scmp.eq.s32.totalorder %s13, 1
    %p150 = scmp.ne.s32.totalorder %s145, %s147
    %p151 = scmp.eq.s32.totalorder %s13, 0
    %p152 = por %p150, %p151
    %p153 = scmp.ne.s32.totalorder %s145, %s147
    %p154 = scmp.eq.s32.totalorder %s18, 1
    %p155 = por %p153, %p154
    %p156 = scmp.ne.s32.totalorder %s147, %s148
    %p157 = scmp.eq.s32.totalorder %s18, 0
    %p158 = por %p156, %p157
    %p159 = scmp.ne.s32.totalorder %s147, %s148
    %p160 = scmp.eq.s32.totalorder %s19, 1
    %p161 = por %p159, %p160
    %p163 = scmp.ne.s32.totalorder %s148, %s162
    %p164 = scmp.eq.s32.totalorder %s19, 0
    %p165 = por %p163, %p164
    %s167 = sadd.s32 %s166, 1
    %p170 = scmp.eq.s32.totalorder %s13, 1
    %p171 = scmp.ne.s32.totalorder %s166, %s168
    %p172 = scmp.eq.s32.totalorder %s13, 0
    %p173 = por %p171, %p172
    %p174 = scmp.ne.s32.totalorder %s166, %s168
    %p175 = scmp.eq.s32.totalorder %s18, 1
    %p176 = por %p174, %p175
    %p177 = scmp.ne.s32.totalorder %s168, %s169
    %p178 = scmp.eq.s32.totalorder %s18, 0
    %p179 = por %p177, %p178
    %p180 = scmp.ne.s32.totalorder %s168, %s169
    %p181 = scmp.eq.s32.totalorder %s19, 1
    %p182 = por %p180, %p181
    %p184 = scmp.ne.s32.totalorder %s169, %s183
    %p185 = scmp.eq.s32.totalorder %s19, 0
    %p186 = por %p184, %p185
    %s187 = ssub.s32 %s20, %s32
    %s188 = ssub.s32 %s21, %s28
    %s189 = sor.u32 %s187, %s188
    %p190 = scmp.eq.s32.totalorder %s189, 0
    %s192 = sadd.s32 %s191, 1
    %s193 = scalar_select %p190, %s191, %s192
    %p196 = pneg %p190
    %p197 = scmp.eq.s32.totalorder %s13, 1
    %p198 = por %p196, %p197
    %p199 = scmp.ne.s32.totalorder %s191, %s194
    %p200 = scmp.eq.s32.totalorder %s13, 0
    %p201 = por %p199, %p200
    %p202 = scmp.ne.s32.totalorder %s191, %s194
    %p203 = scmp.eq.s32.totalorder %s18, 1
    %p204 = por %p202, %p203
    %p205 = scmp.ne.s32.totalorder %s194, %s195
    %p206 = scmp.eq.s32.totalorder %s18, 0
    %p207 = por %p205, %p206
    %p208 = scmp.ne.s32.totalorder %s194, %s195
    %p209 = scmp.eq.s32.totalorder %s19, 1
    %p210 = por %p208, %p209
    %p212 = scmp.ne.s32.totalorder %s195, %s211
    %p213 = scmp.eq.s32.totalorder %s19, 0
    %p214 = por %p212, %p213
    %p215 = scmp.le.s32.totalorder 1, %s13
    %p216 = scmp.lt.s32.totalorder %s13, 3
    %p217 = pnand %p215, %p216
    %p218 = pneg %p217
    // Predicated region
    $region9: #{tpu_custom_call.1} parent=5 // pred_check
      _
    $region10: #{tpu_custom_call.1} parent=5 // pred_check_branch
      %220 = sbr.rel (%p217) target = $region12
    $region11: #{tpu_custom_call.1} parent=5 // pred_region
      %s221 = ssub.s32 %s13, 1
      // Predicated region
      $region13: #{tpu_custom_call.1} parent=11 // pred_check
        %p222 = pneg %p74
      $region14: #{tpu_custom_call.1} parent=11 // pred_check_branch
        %224 = sbr.rel (%p222) target = $region16
      $region15: #{tpu_custom_call.1} parent=11 // pred_region
        _
      $region16: #{tpu_custom_call.1} parent=11 // pred_fallthru
        _
      // Predicated region
      $region17: #{tpu_custom_call.1} parent=11 // pred_check
        %p225 = pneg %p95
      $region18: #{tpu_custom_call.1} parent=11 // pred_check_branch
        %227 = sbr.rel (%p225) target = $region20
      $region19: #{tpu_custom_call.1} parent=11 // pred_region
        _
      $region20: #{tpu_custom_call.1} parent=11 // pred_fallthru
        _
      // Predicated region
      $region21: #{tpu_custom_call.1} parent=11 // pred_check
        %p228 = pneg %p116
      $region22: #{tpu_custom_call.1} parent=11 // pred_check_branch
        %230 = sbr.rel (%p228) target = $region24
      $region23: #{tpu_custom_call.1} parent=11 // pred_region
        _
      $region24: #{tpu_custom_call.1} parent=11 // pred_fallthru
        _
      // Predicated region
      $region25: #{tpu_custom_call.1} parent=11 // pred_check
        %p231 = pneg %p137
      $region26: #{tpu_custom_call.1} parent=11 // pred_check_branch
        %233 = sbr.rel (%p231) target = $region28
      $region27: #{tpu_custom_call.1} parent=11 // pred_region
        _
      $region28: #{tpu_custom_call.1} parent=11 // pred_fallthru
        _
      // Predicated region
      $region29: #{tpu_custom_call.1} parent=11 // pred_check
        %p234 = pneg %p158
      $region30: #{tpu_custom_call.1} parent=11 // pred_check_branch
        %236 = sbr.rel (%p234) target = $region32
      $region31: #{tpu_custom_call.1} parent=11 // pred_region
        _
      $region32: #{tpu_custom_call.1} parent=11 // pred_fallthru
        _
      // Predicated region
      $region33: #{tpu_custom_call.1} parent=11 // pred_check
        %p237 = pneg %p179
      $region34: #{tpu_custom_call.1} parent=11 // pred_check_branch
        %239 = sbr.rel (%p237) target = $region36
      $region35: #{tpu_custom_call.1} parent=11 // pred_region
        _
      $region36: #{tpu_custom_call.1} parent=11 // pred_fallthru
        _
    $region12: #{tpu_custom_call.1} parent=5 // pred_fallthru
      _
    %p240 = scmp.lt.s32.totalorder %s13, 2
    // Predicated region
    $region37: #{tpu_custom_call.1} parent=5 // pred_check
      %p241 = pneg %p240
    $region38: #{tpu_custom_call.1} parent=5 // pred_check_branch
      %243 = sbr.rel (%p241) target = $region40
    $region39: #{tpu_custom_call.1} parent=5 // pred_region
      // Predicated region
      $region41: #{tpu_custom_call.1} parent=39 // pred_check
        %p244 = pneg %p47
      $region42: #{tpu_custom_call.1} parent=39 // pred_check_branch
        %246 = sbr.rel (%p244) target = $region44
      $region43: #{tpu_custom_call.1} parent=39 // pred_region
        %p247 = scmp.lt.s32.totalorder %s20, 1
        %s248 = scalar_select %p247, %s20, 1
        %p249 = scmp.lt.s32.totalorder %s21, 0
        %s250 = scalar_select %p249, %s21, 0
        %s251 = smul.addr %s248, 4
        %s252 = sadd.s32 %s250, %s251
        %s253 = smul.addr %s252, 8
        %s254 = scalar_lea.vmem %s0, %s253
      $region44: #{tpu_custom_call.1} parent=39 // pred_fallthru
        _
    $region40: #{tpu_custom_call.1} parent=5 // pred_fallthru
      _
    %p255 = scmp.le.s32.totalorder 1, %s13
    %p256 = scmp.lt.s32.totalorder %s13, 3
    %p257 = pnand %p255, %p256
    %p258 = pneg %p257
    // Predicated region
    $region45: #{tpu_custom_call.1} parent=5 // pred_check
      _
    $region46: #{tpu_custom_call.1} parent=5 // pred_check_branch
      %260 = sbr.rel (%p257) target = $region48
    $region47: #{tpu_custom_call.1} parent=5 // pred_region
      %s261 = ssub.s32 %s13, 1
      %p262 = scmp.lt.s32.totalorder %s22, 1
      %s263 = scalar_select %p262, %s22, 1
      %p264 = scmp.lt.s32.totalorder %s23, 0
      %s265 = scalar_select %p264, %s23, 0
      %s266 = smul.addr %s263, 4
      %s267 = sadd.s32 %s265, %s266
      %s268 = smul.addr %s267, 8
      %s269 = scalar_lea.vmem %s0, %s268
      %p270 = pneg %p53
      %p271 = pneg %p50
      %p272 = pneg %p74
      %p273 = pneg %p71
      %p274 = pneg %p95
      %p275 = pneg %p92
      %p276 = pneg %p116
      %p277 = pneg %p113
      %p278 = pneg %p137
      %p279 = pneg %p134
      %p280 = pneg %p158
      %p281 = pneg %p155
      %p282 = pneg %p179
      %p283 = pneg %p176
      %p284 = pneg %p207
      %p285 = pneg %p204
      %p286 = scmp.lt.s32.totalorder %s22, 1
      %s287 = scalar_select %p286, %s22, 1
      %p288 = scmp.lt.s32.totalorder %s23, 0
      %s289 = scalar_select %p288, %s23, 0
      %s290 = smul.addr %s287, 4
      %s291 = sadd.s32 %s289, %s290
      %s292 = smul.addr %s291, 8
      %s293 = scalar_lea.vmem %s7, %s292
      %p294 = scmp.lt.s32.totalorder %s22, 1
      %s295 = scalar_select %p294, %s22, 1
      %p296 = scmp.lt.s32.totalorder %s23, 0
      %s297 = scalar_select %p296, %s23, 0
      %s298 = smul.addr %s295, 4
      %s299 = sadd.s32 %s297, %s298
      %s300 = smul.addr %s299, 8
      %s301 = scalar_lea.vmem %s0, %s300
      %p302 = scmp.lt.s32.totalorder %s22, 1
      %s303 = scalar_select %p302, %s22, 1
      %p304 = scmp.lt.s32.totalorder %s23, 0
      %s305 = scalar_select %p304, %s23, 0
      %s306 = smul.addr %s303, 4
      %s307 = sadd.s32 %s305, %s306
      %s308 = smul.addr %s307, 8
      %s309 = scalar_lea.vmem %s7, %s308
      %v310 = vld [vmem:[%s301] sm:$0xff]
      %v311 = vld [vmem:[%s301 + $0x8] sm:$0xff]
      %v312 = vld [vmem:[%s301 + $0x10] sm:$0xff]
      %v313 = vld [vmem:[%s301 + $0x18] sm:$0xff]
      %v314 = vld [vmem:[%s1] sm:$0xff]
      %v315 = vld [vmem:[%s1 + $0x8] sm:$0xff]
      %v316 = vld [vmem:[%s1 + $0x10] sm:$0xff]
      %v317 = vld [vmem:[%s1 + $0x18] sm:$0xff]
      %v318 = vld [vmem:[%s1 + $0x20] sm:$0xff]
      %v319 = vld [vmem:[%s1 + $0x28] sm:$0xff]
      %v320 = vld [vmem:[%s1 + $0x30] sm:$0xff]
      %v321 = vld [vmem:[%s1 + $0x38] sm:$0xff]
      %v322 = vld [vmem:[%s1 + $0x40] sm:$0xff]
      %v323 = vld [vmem:[%s1 + $0x48] sm:$0xff]
      %v324 = vld [vmem:[%s1 + $0x50] sm:$0xff]
      %v325 = vld [vmem:[%s1 + $0x58] sm:$0xff]
      %v326 = vld [vmem:[%s1 + $0x60] sm:$0xff]
      %v327 = vld [vmem:[%s1 + $0x68] sm:$0xff]
      %v328 = vld [vmem:[%s1 + $0x70] sm:$0xff]
      %v329 = vld [vmem:[%s1 + $0x78] sm:$0xff]
      %v330 = vld [vmem:[%s2] sm:$0xff]
      %v331 = vld [vmem:[%s2 + $0x8] sm:$0xff]
      %v332 = vld [vmem:[%s2 + $0x10] sm:$0xff]
      %v333 = vld [vmem:[%s2 + $0x18] sm:$0xff]
      %v334 = vld [vmem:[%s2 + $0x20] sm:$0xff]
      %v335 = vld [vmem:[%s2 + $0x28] sm:$0xff]
      %v336 = vld [vmem:[%s2 + $0x30] sm:$0xff]
      %v337 = vld [vmem:[%s2 + $0x38] sm:$0xff]
      %v338 = vld [vmem:[%s2 + $0x40] sm:$0xff]
      %v339 = vld [vmem:[%s2 + $0x48] sm:$0xff]
      %v340 = vld [vmem:[%s2 + $0x50] sm:$0xff]
      %v341 = vld [vmem:[%s2 + $0x58] sm:$0xff]
      %v342 = vld [vmem:[%s2 + $0x60] sm:$0xff]
      %v343 = vld [vmem:[%s2 + $0x68] sm:$0xff]
      %v344 = vld [vmem:[%s2 + $0x70] sm:$0xff]
      %v345 = vld [vmem:[%s2 + $0x78] sm:$0xff]
      %347 = vset.pattern.permute.xlu0 0
      %348 = vperm.xlu0 %347, %v330
      %v349 = vpop.permute.xlu0 %348
      %352 = vset.pattern.permute.xlu0 0
      %353 = vperm.xlu0 %352, %v331
      %v354 = vpop.permute.xlu0 %353
      %357 = vset.pattern.permute.xlu0 0
      %358 = vperm.xlu0 %357, %v332
      %v359 = vpop.permute.xlu0 %358
      %362 = vset.pattern.permute.xlu0 0
      %363 = vperm.xlu0 %362, %v333
      %v364 = vpop.permute.xlu0 %363
      %367 = vset.pattern.permute.xlu0 0
      %368 = vperm.xlu0 %367, %v334
      %v369 = vpop.permute.xlu0 %368
      %372 = vset.pattern.permute.xlu0 0
      %373 = vperm.xlu0 %372, %v335
      %v374 = vpop.permute.xlu0 %373
      %377 = vset.pattern.permute.xlu0 0
      %378 = vperm.xlu0 %377, %v336
      %v379 = vpop.permute.xlu0 %378
      %382 = vset.pattern.permute.xlu0 0
      %383 = vperm.xlu0 %382, %v337
      %v384 = vpop.permute.xlu0 %383
      %387 = vset.pattern.permute.xlu0 0
      %388 = vperm.xlu0 %387, %v338
      %v389 = vpop.permute.xlu0 %388
      %392 = vset.pattern.permute.xlu0 0
      %393 = vperm.xlu0 %392, %v339
      %v394 = vpop.permute.xlu0 %393
      %397 = vset.pattern.permute.xlu0 0
      %398 = vperm.xlu0 %397, %v340
      %v399 = vpop.permute.xlu0 %398
      %402 = vset.pattern.permute.xlu0 0
      %403 = vperm.xlu0 %402, %v341
      %v404 = vpop.permute.xlu0 %403
      %407 = vset.pattern.permute.xlu0 0
      %408 = vperm.xlu0 %407, %v342
      %v409 = vpop.permute.xlu0 %408
      %412 = vset.pattern.permute.xlu0 0
      %413 = vperm.xlu0 %412, %v343
      %v414 = vpop.permute.xlu0 %413
      %417 = vset.pattern.permute.xlu0 0
      %418 = vperm.xlu0 %417, %v344
      %v419 = vpop.permute.xlu0 %418
      %422 = vset.pattern.permute.xlu0 0
      %423 = vperm.xlu0 %422, %v345
      %v424 = vpop.permute.xlu0 %423
      %vm426 = vcmask 261120
      %v428 = vsel %vm426, %v314, 0
      %v431 = vsel %vm426, %v315, 0
      %v434 = vsel %vm426, %v316, 0
      %v437 = vsel %vm426, %v317, 0
      %v440 = vsel %vm426, %v318, 0
      %v443 = vsel %vm426, %v319, 0
      %v446 = vsel %vm426, %v320, 0
      %v449 = vsel %vm426, %v321, 0
      %v452 = vsel %vm426, %v322, 0
      %v455 = vsel %vm426, %v323, 0
      %v458 = vsel %vm426, %v324, 0
      %v461 = vsel %vm426, %v325, 0
      %v464 = vsel %vm426, %v326, 0
      %v467 = vsel %vm426, %v327, 0
      %v470 = vsel %vm426, %v328, 0
      %v473 = vsel %vm426, %v329, 0
      %475 = vmatpush.msra.mxu0 0.0
      %476 = vmatpush.msra.mxu0 0.0
      %477 = vmatpush.msra.mxu0 0.0
      %478 = vmatpush.msra.mxu0 0.0
      %479 = vmatpush.msra.mxu0 0.0
      %480 = vmatpush.msra.mxu0 0.0
      %481 = vmatpush.msra.mxu0 0.0
      %482 = vmatpush.msra.mxu0 0.0
      %483 = vmatpush.msra.mxu0 0.0
      %484 = vmatpush.msra.mxu0 0.0
      %485 = vmatpush.msra.mxu0 0.0
      %486 = vmatpush.msra.mxu0 0.0
      %487 = vmatpush.msra.mxu0 %v313
      %488 = vmatpush.msra.mxu0 %v312
      %489 = vmatpush.msra.mxu0 %v311
      %490 = vmatpush.msra.mxu0 %v310
      %491 = vmatmul.f32.gmra.mxu0 %v428
      %v492 = vpop.f32.mrf.mxu0
      %v493 = vadd.f32 %v349, %v492
      %494 = vmatmul.f32.gmra.mxu0 %v431
      %v495 = vpop.f32.mrf.mxu0
      %v496 = vadd.f32 %v354, %v495
      %497 = vmatmul.f32.gmra.mxu0 %v434
      %v498 = vpop.f32.mrf.mxu0
      %v499 = vadd.f32 %v359, %v498
      %500 = vmatmul.f32.gmra.mxu0 %v437
      %v501 = vpop.f32.mrf.mxu0
      %v502 = vadd.f32 %v364, %v501
      %503 = vmatmul.f32.gmra.mxu0 %v440
      %v504 = vpop.f32.mrf.mxu0
      %v505 = vadd.f32 %v369, %v504
      %506 = vmatmul.f32.gmra.mxu0 %v443
      %v507 = vpop.f32.mrf.mxu0
      %v508 = vadd.f32 %v374, %v507
      %509 = vmatmul.f32.gmra.mxu0 %v446
      %v510 = vpop.f32.mrf.mxu0
      %v511 = vadd.f32 %v379, %v510
      %512 = vmatmul.f32.gmra.mxu0 %v449
      %v513 = vpop.f32.mrf.mxu0
      %v514 = vadd.f32 %v384, %v513
      %515 = vmatmul.f32.gmra.mxu0 %v452
      %v516 = vpop.f32.mrf.mxu0
      %v517 = vadd.f32 %v389, %v516
      %518 = vmatmul.f32.gmra.mxu0 %v455
      %v519 = vpop.f32.mrf.mxu0
      %v520 = vadd.f32 %v394, %v519
      %521 = vmatmul.f32.gmra.mxu0 %v458
      %v522 = vpop.f32.mrf.mxu0
      %v523 = vadd.f32 %v399, %v522
      %524 = vmatmul.f32.gmra.mxu0 %v461
      %v525 = vpop.f32.mrf.mxu0
      %v526 = vadd.f32 %v404, %v525
      %527 = vmatmul.f32.gmra.mxu0 %v464
      %v528 = vpop.f32.mrf.mxu0
      %v529 = vadd.f32 %v409, %v528
      %530 = vmatmul.f32.gmra.mxu0 %v467
      %v531 = vpop.f32.mrf.mxu0
      %v532 = vadd.f32 %v414, %v531
      %533 = vmatmul.f32.gmra.mxu0 %v470
      %v534 = vpop.f32.mrf.mxu0
      %v535 = vadd.f32 %v419, %v534
      %536 = vmatmul.f32.gmra.mxu0 %v473
      %v537 = vpop.f32.mrf.mxu0
      %v538 = vadd.f32 %v424, %v537
      %539 = vdwg.mxu0
      %v540 = vmul.f32 %v493, 0.5
      %v541 = vmul.f32 %v496, 0.5
      %v542 = vmul.f32 %v499, 0.5
      %v543 = vmul.f32 %v502, 0.5
      %v544 = vmul.f32 %v505, 0.5
      %v545 = vmul.f32 %v508, 0.5
      %v546 = vmul.f32 %v511, 0.5
      %v547 = vmul.f32 %v514, 0.5
      %v548 = vmul.f32 %v517, 0.5
      %v549 = vmul.f32 %v520, 0.5
      %v550 = vmul.f32 %v523, 0.5
      %v551 = vmul.f32 %v526, 0.5
      %v552 = vmul.f32 %v529, 0.5
      %v553 = vmul.f32 %v532, 0.5
      %v554 = vmul.f32 %v535, 0.5
      %v555 = vmul.f32 %v538, 0.5
      %v556 = vmul.f32 %v493, 0.044715
      %v557 = vmul.f32 %v496, 0.044715
      %v558 = vmul.f32 %v499, 0.044715
      %v559 = vmul.f32 %v502, 0.044715
      %v560 = vmul.f32 %v505, 0.044715
      %v561 = vmul.f32 %v508, 0.044715
      %v562 = vmul.f32 %v511, 0.044715
      %v563 = vmul.f32 %v514, 0.044715
      %v564 = vmul.f32 %v517, 0.044715
      %v565 = vmul.f32 %v520, 0.044715
      %v566 = vmul.f32 %v523, 0.044715
      %v567 = vmul.f32 %v526, 0.044715
      %v568 = vmul.f32 %v529, 0.044715
      %v569 = vmul.f32 %v532, 0.044715
      %v570 = vmul.f32 %v535, 0.044715
      %v571 = vmul.f32 %v538, 0.044715
      %v572 = vmul.f32 %v556, %v493
      %v573 = vmul.f32 %v557, %v496
      %v574 = vmul.f32 %v558, %v499
      %v575 = vmul.f32 %v559, %v502
      %v576 = vmul.f32 %v560, %v505
      %v577 = vmul.f32 %v561, %v508
      %v578 = vmul.f32 %v562, %v511
      %v579 = vmul.f32 %v563, %v514
      %v580 = vmul.f32 %v564, %v517
      %v581 = vmul.f32 %v565, %v520
      %v582 = vmul.f32 %v566, %v523
      %v583 = vmul.f32 %v567, %v526
      %v584 = vmul.f32 %v568, %v529
      %v585 = vmul.f32 %v569, %v532
      %v586 = vmul.f32 %v570, %v535
      %v587 = vmul.f32 %v571, %v538
      %v588 = vmul.f32 %v572, %v493
      %v589 = vmul.f32 %v573, %v496
      %v590 = vmul.f32 %v574, %v499
      %v591 = vmul.f32 %v575, %v502
      %v592 = vmul.f32 %v576, %v505
      %v593 = vmul.f32 %v577, %v508
      %v594 = vmul.f32 %v578, %v511
      %v595 = vmul.f32 %v579, %v514
      %v596 = vmul.f32 %v580, %v517
      %v597 = vmul.f32 %v581, %v520
      %v598 = vmul.f32 %v582, %v523
      %v599 = vmul.f32 %v583, %v526
      %v600 = vmul.f32 %v584, %v529
      %v601 = vmul.f32 %v585, %v532
      %v602 = vmul.f32 %v586, %v535
      %v603 = vmul.f32 %v587, %v538
      %v604 = vadd.f32 %v493, %v588
      %v605 = vadd.f32 %v496, %v589
      %v606 = vadd.f32 %v499, %v590
      %v607 = vadd.f32 %v502, %v591
      %v608 = vadd.f32 %v505, %v592
      %v609 = vadd.f32 %v508, %v593
      %v610 = vadd.f32 %v511, %v594
      %v611 = vadd.f32 %v514, %v595
      %v612 = vadd.f32 %v517, %v596
      %v613 = vadd.f32 %v520, %v597
      %v614 = vadd.f32 %v523, %v598
      %v615 = vadd.f32 %v526, %v599
      %v616 = vadd.f32 %v529, %v600
      %v617 = vadd.f32 %v532, %v601
      %v618 = vadd.f32 %v535, %v602
      %v619 = vadd.f32 %v538, %v603
      %v620 = vmul.f32 %v604, 0.7978846
      %v621 = vmul.f32 %v605, 0.7978846
      %v622 = vmul.f32 %v606, 0.7978846
      %v623 = vmul.f32 %v607, 0.7978846
      %v624 = vmul.f32 %v608, 0.7978846
      %v625 = vmul.f32 %v609, 0.7978846
      %v626 = vmul.f32 %v610, 0.7978846
      %v627 = vmul.f32 %v611, 0.7978846
      %v628 = vmul.f32 %v612, 0.7978846
      %v629 = vmul.f32 %v613, 0.7978846
      %v630 = vmul.f32 %v614, 0.7978846
      %v631 = vmul.f32 %v615, 0.7978846
      %v632 = vmul.f32 %v616, 0.7978846
      %v633 = vmul.f32 %v617, 0.7978846
      %v634 = vmul.f32 %v618, 0.7978846
      %v635 = vmul.f32 %v619, 0.7978846
      %v636 = vtanh.pop %v620
      %v637 = vtanh.pop %v621
      %v638 = vtanh.pop %v622
      %v639 = vtanh.pop %v623
      %v640 = vtanh.pop %v624
      %v641 = vtanh.pop %v625
      %v642 = vtanh.pop %v626
      %v643 = vtanh.pop %v627
      %v644 = vtanh.pop %v628
      %v645 = vtanh.pop %v629
      %v646 = vtanh.pop %v630
      %v647 = vtanh.pop %v631
      %v648 = vtanh.pop %v632
      %v649 = vtanh.pop %v633
      %v650 = vtanh.pop %v634
      %v651 = vtanh.pop %v635
      %v652 = vadd.f32 %v636, 1.0
      %v653 = vadd.f32 %v637, 1.0
      %v654 = vadd.f32 %v638, 1.0
      %v655 = vadd.f32 %v639, 1.0
      %v656 = vadd.f32 %v640, 1.0
      %v657 = vadd.f32 %v641, 1.0
      %v658 = vadd.f32 %v642, 1.0
      %v659 = vadd.f32 %v643, 1.0
      %v660 = vadd.f32 %v644, 1.0
      %v661 = vadd.f32 %v645, 1.0
      %v662 = vadd.f32 %v646, 1.0
      %v663 = vadd.f32 %v647, 1.0
      %v664 = vadd.f32 %v648, 1.0
      %v665 = vadd.f32 %v649, 1.0
      %v666 = vadd.f32 %v650, 1.0
      %v667 = vadd.f32 %v651, 1.0
      %v668 = vmul.f32 %v540, %v652
      %v669 = vmul.f32 %v541, %v653
      %v670 = vmul.f32 %v542, %v654
      %v671 = vmul.f32 %v543, %v655
      %v672 = vmul.f32 %v544, %v656
      %v673 = vmul.f32 %v545, %v657
      %v674 = vmul.f32 %v546, %v658
      %v675 = vmul.f32 %v547, %v659
      %v676 = vmul.f32 %v548, %v660
      %v677 = vmul.f32 %v549, %v661
      %v678 = vmul.f32 %v550, %v662
      %v679 = vmul.f32 %v551, %v663
      %v680 = vmul.f32 %v552, %v664
      %v681 = vmul.f32 %v553, %v665
      %v682 = vmul.f32 %v554, %v666
      %v683 = vmul.f32 %v555, %v667
      %v684 = vld [vmem:[%s3] sm:$0xff]
      %v685 = vld [vmem:[%s3 + $0x8] sm:$0xff]
      %v686 = vld [vmem:[%s3 + $0x10] sm:$0xff]
      %v687 = vld [vmem:[%s3 + $0x18] sm:$0xff]
      %v688 = vld [vmem:[%s4] sm:$0xff]
      %v689 = vld [vmem:[%s4 + $0x8] sm:$0xff]
      %v690 = vld [vmem:[%s4 + $0x10] sm:$0xff]
      %v691 = vld [vmem:[%s4 + $0x18] sm:$0xff]
      %693 = vset.pattern.permute.xlu0 0
      %694 = vperm.xlu0 %693, %v688
      %v695 = vpop.permute.xlu0 %694
      %698 = vset.pattern.permute.xlu0 0
      %699 = vperm.xlu0 %698, %v689
      %v700 = vpop.permute.xlu0 %699
      %703 = vset.pattern.permute.xlu0 0
      %704 = vperm.xlu0 %703, %v690
      %v705 = vpop.permute.xlu0 %704
      %708 = vset.pattern.permute.xlu0 0
      %709 = vperm.xlu0 %708, %v691
      %v710 = vpop.permute.xlu0 %709
      %712 = vmatpush.msra.mxu0 %v683
      %713 = vmatpush.msra.mxu0 %v682
      %714 = vmatpush.msra.mxu0 %v681
      %715 = vmatpush.msra.mxu0 %v680
      %716 = vmatpush.msra.mxu0 %v679
      %717 = vmatpush.msra.mxu0 %v678
      %718 = vmatpush.msra.mxu0 %v677
      %719 = vmatpush.msra.mxu0 %v676
      %720 = vmatpush.msra.mxu0 %v675
      %721 = vmatpush.msra.mxu0 %v674
      %722 = vmatpush.msra.mxu0 %v673
      %723 = vmatpush.msra.mxu0 %v672
      %724 = vmatpush.msra.mxu0 %v671
      %725 = vmatpush.msra.mxu0 %v670
      %726 = vmatpush.msra.mxu0 %v669
      %727 = vmatpush.msra.mxu0 %v668
      %728 = vmatmul.f32.gmra.mxu0 %v684
      %v729 = vpop.f32.mrf.mxu0
      %v730 = vadd.f32 %v695, %v729
      %731 = vmatmul.f32.gmra.mxu0 %v685
      %v732 = vpop.f32.mrf.mxu0
      %v733 = vadd.f32 %v700, %v732
      %734 = vmatmul.f32.gmra.mxu0 %v686
      %v735 = vpop.f32.mrf.mxu0
      %v736 = vadd.f32 %v705, %v735
      %737 = vmatmul.f32.gmra.mxu0 %v687
      %v738 = vpop.f32.mrf.mxu0
      %v739 = vadd.f32 %v710, %v738
      %740 = vdwg.mxu0
      %v741 = vadd.f32 %v730, %v310
      %v742 = vadd.f32 %v733, %v311
      %v743 = vadd.f32 %v736, %v312
      %v744 = vadd.f32 %v739, %v313
      %vm745 = vcmask 130048
      %v746 = vsel %vm745, %v741, 0.0
      %v747 = vsel %vm745, %v742, 0.0
      %v748 = vadd.f32 %v746, %v747
      %v749 = vsel %vm745, %v743, 0.0
      %v750 = vadd.f32 %v748, %v749
      %v751 = vsel %vm745, %v744, 0.0
      %v752 = vadd.f32 %v750, %v751
      %v753 = vrot.slane %v752, 4
      %v754 = vadd.f32 %v752, %v753
      %v755 = vrot.slane %v754, 2
      %v756 = vadd.f32 %v754, %v755
      %v757 = vrot.slane %v756, 1
      %v758 = vadd.f32 %v756, %v757
      %v759 = vrcp.pop 32.0
      %v760 = vmul.f32 32.0, %v759
      %v761 = vsub.f32 1.0, %v760
      %v762 = vmul.f32 %v759, %v761
      %v763 = vadd.f32 %v759, %v762
      %vm764 = vweird.f32 %v759
      %v765 = vsel %vm764, %v759, %v763
      %v766 = vmul.f32 %v758, %v765
      %v767 = vsub.f32 %v741, %v766
      %v768 = vsub.f32 %v742, %v766
      %v769 = vsub.f32 %v743, %v766
      %v770 = vsub.f32 %v744, %v766
      %v771 = vmul.f32 %v767, %v767
      %v772 = vmul.f32 %v768, %v768
      %v773 = vmul.f32 %v769, %v769
      %v774 = vmul.f32 %v770, %v770
      %v775 = vsel %vm745, %v771, 0.0
      %v776 = vsel %vm745, %v772, 0.0
      %v777 = vadd.f32 %v775, %v776
      %v778 = vsel %vm745, %v773, 0.0
      %v779 = vadd.f32 %v777, %v778
      %v780 = vsel %vm745, %v774, 0.0
      %v781 = vadd.f32 %v779, %v780
      %v782 = vrot.slane %v781, 4
      %v783 = vadd.f32 %v781, %v782
      %v784 = vrot.slane %v783, 2
      %v785 = vadd.f32 %v783, %v784
      %v786 = vrot.slane %v785, 1
      %v787 = vadd.f32 %v785, %v786
      %v788 = vmul.f32 %v787, %v765
      %v789 = vadd.f32 %v788, 1e-05
      %v790 = vrsqrt.pop %v789
      %v791 = vmul.f32 %v790, %v789
      %v792 = vmul.f32 %v791, %v790
      %v793 = vmul.f32 0.5, %v792
      %v794 = vsub.f32 1.5, %v793
      %v795 = vmul.f32 %v790, %v794
      %vm796 = vweird.f32 %v789
      %vm797 = vweird.f32 %v790
      %vm798 = vmor %vm796, %vm797
      %v799 = vsel %vm798, %v790, %v795
      %v800 = vmul.f32 %v767, %v799
      %v801 = vmul.f32 %v768, %v799
      %v802 = vmul.f32 %v769, %v799
      %v803 = vmul.f32 %v770, %v799
      %v804 = vld [vmem:[%s6] sm:$0xff]
      %v805 = vld [vmem:[%s6 + $0x8] sm:$0xff]
      %v806 = vld [vmem:[%s6 + $0x10] sm:$0xff]
      %v807 = vld [vmem:[%s6 + $0x18] sm:$0xff]
      %809 = vset.pattern.permute.xlu0 0
      %810 = vperm.xlu0 %809, %v804
      %v811 = vpop.permute.xlu0 %810
      %814 = vset.pattern.permute.xlu0 0
      %815 = vperm.xlu0 %814, %v805
      %v816 = vpop.permute.xlu0 %815
      %819 = vset.pattern.permute.xlu0 0
      %820 = vperm.xlu0 %819, %v806
      %v821 = vpop.permute.xlu0 %820
      %824 = vset.pattern.permute.xlu0 0
      %825 = vperm.xlu0 %824, %v807
      %v826 = vpop.permute.xlu0 %825
      %v828 = vadd.f32 %v800, %v811
      %v829 = vadd.f32 %v801, %v816
      %v830 = vadd.f32 %v802, %v821
      %v831 = vadd.f32 %v803, %v826
      %v832 = vld [vmem:[%s5] sm:$0xff]
      %v833 = vld [vmem:[%s5 + $0x8] sm:$0xff]
      %v834 = vld [vmem:[%s5 + $0x10] sm:$0xff]
      %v835 = vld [vmem:[%s5 + $0x18] sm:$0xff]
      %837 = vset.pattern.permute.xlu0 0
      %838 = vperm.xlu0 %837, %v832
      %v839 = vpop.permute.xlu0 %838
      %842 = vset.pattern.permute.xlu0 0
      %843 = vperm.xlu0 %842, %v833
      %v844 = vpop.permute.xlu0 %843
      %847 = vset.pattern.permute.xlu0 0
      %848 = vperm.xlu0 %847, %v834
      %v849 = vpop.permute.xlu0 %848
      %852 = vset.pattern.permute.xlu0 0
      %853 = vperm.xlu0 %852, %v835
      %v854 = vpop.permute.xlu0 %853
      %v856 = vmul.f32 %v828, %v839
      %v857 = vmul.f32 %v829, %v844
      %v858 = vmul.f32 %v830, %v849
      %v859 = vmul.f32 %v831, %v854
      %860 = vst.msk [vmem:[%s309] sm:$0xff] %vm745, %v856
      %861 = vst.msk [vmem:[%s309 + $0x8] sm:$0xff] %vm745, %v857
      %862 = vst.msk [vmem:[%s309 + $0x10] sm:$0xff] %vm745, %v858
      %863 = vst.msk [vmem:[%s309 + $0x18] sm:$0xff] %vm745, %v859
      %p864 = scmp.lt.s32.totalorder %s22, 1
      %s865 = scalar_select %p864, %s22, 1
      %p866 = scmp.lt.s32.totalorder %s23, 0
      %s867 = scalar_select %p866, %s23, 0
      %s868 = smul.addr %s865, 4
      %s869 = sadd.s32 %s867, %s868
      %s870 = smul.addr %s869, 8
      %s871 = scalar_lea.vmem %s7, %s870
      // Predicated region
      $region49: #{tpu_custom_call.1} parent=47 // pred_check
        %p872 = pneg %p204
      $region50: #{tpu_custom_call.1} parent=47 // pred_check_branch
        %874 = sbr.rel (%p872) target = $region52
      $region51: #{tpu_custom_call.1} parent=47 // pred_region
        _
      $region52: #{tpu_custom_call.1} parent=47 // pred_fallthru
        _
    $region48: #{tpu_custom_call.1} parent=5 // pred_fallthru
      _
    %p875 = scmp.le.s32.totalorder 2, %s13
    // Predicated region
    $region53: #{tpu_custom_call.1} parent=5 // pred_check
      %p876 = pneg %p875
    $region54: #{tpu_custom_call.1} parent=5 // pred_check_branch
      %878 = sbr.rel (%p876) target = $region56
    $region55: #{tpu_custom_call.1} parent=5 // pred_region
      %s879 = ssub.s32 %s13, 2
      // Predicated region
      $region57: #{tpu_custom_call.1} parent=55 // pred_check
        %p880 = pneg %p210
      $region58: #{tpu_custom_call.1} parent=55 // pred_check_branch
        %882 = sbr.rel (%p880) target = $region60
      $region59: #{tpu_custom_call.1} parent=55 // pred_region
        %p883 = scmp.lt.s32.totalorder %s24, 1
        %s884 = scalar_select %p883, %s24, 1
        %p885 = scmp.lt.s32.totalorder %s25, 0
        %s886 = scalar_select %p885, %s25, 0
        %s887 = smul.addr %s884, 4
        %s888 = sadd.s32 %s886, %s887
        %s889 = smul.addr %s888, 8
        %s890 = scalar_lea.vmem %s7, %s889
      $region60: #{tpu_custom_call.1} parent=55 // pred_fallthru
        _
    $region56: #{tpu_custom_call.1} parent=5 // pred_fallthru
      _
  $region6: #{tpu_custom_call.1} parent=0 // loop_footer
    %s17 = sadd.s32 1, %s13
  $region7: #{tpu_custom_call.1} parent=0 // loop_footer_branch
    %12 = sbr.rel target = $region3
  $region8: #{tpu_custom_call.1} parent=0 // loop_exit
    _

</llo_original>
